<compile_context>
chip_gen: v6e
topology: v6e:2x2x1
jax: 0.10.0
libtpu: 0.0.40
codegen_flags: <defaults>
</compile_context>

<pallas_src>
import functools
import math

import jax
import jax.numpy as jnp
from jax import lax
from jax.experimental import pallas as pl
from jax.experimental.pallas import tpu as pltpu

LN_EPS = 1e-5  # PyTorch nn.LayerNorm default


def _round_up(n, m):
    return ((n + m - 1) // m) * m


def _head_kernel(x_ref, m_ref, wa1_ref, ba1_ref, wa2_ref,
                 w1_ref, b1_ref, g_ref, be_ref, w2_ref, b2_ref,
                 o_ref, *, hidden_dim, bf16_eltwise):
    """x_ref: [TB, Sp, Hp] f32 (batch-major, straight from HBM).  m_ref: [TB, Sp, 1]."""
    TB, Sp, Hp = x_ref.shape
    f32 = jnp.float32

    # ---- load the f32 tile once; MXU operand cast happens in-kernel ----
    xf = x_ref[...]                                   # (TB, Sp, Hp) f32
    x2 = xf.reshape(TB * Sp, Hp)                      # collapse leading dims (layout no-op)
    xm = x2.astype(wa1_ref.dtype)

    # ---- attention scorer: ONE large-M matmul + ONE tanh over all (batch, seq) rows ----
    t = jnp.dot(xm, wa1_ref[...], preferred_element_type=f32) + ba1_ref[...]
    if bf16_eltwise:
        # v6e/v7x: bf16 EUP tanh is ~2x f32 throughput; score precision is ample.
        t = jnp.tanh(t.astype(jnp.bfloat16)).astype(f32)
    else:
        t = jnp.tanh(t)                               # f32 tanh (v5e / validation path)
    t3 = t.reshape(TB, Sp, Hp)                        # split leading dim back (Sp % 8 == 0)
    sc = jnp.sum(t3 * wa2_ref[...], axis=-1, keepdims=True)      # (TB, Sp, 1) lane reduce

    # ---- mask + softmax over seq (torch: s*m + (1-m)*(-1e9); F.softmax dim=1) ----
    m3 = m_ref[...]
    sc = sc * m3 + (1.0 - m3) * (-1e9)
    sc = sc - jnp.max(sc, axis=1, keepdims=True)
    e = jnp.exp(sc)
    w3 = e / jnp.sum(e, axis=1, keepdims=True)        # (TB, Sp, 1) f32

    # ---- attention pooling in full f32 (x is never quantized for the pooling mul) ----
    pooled = jnp.sum(xf * w3, axis=1)                 # (TB, Hp) f32

    # ---- classifier layer 1: Linear -> LayerNorm (two-pass) -> ReLU -> Dropout(eval) ----
    h = jnp.dot(pooled.astype(w1_ref.dtype), w1_ref[...],
                preferred_element_type=f32) + b1_ref[...]
    # Padded columns of h are exactly 0 (zero-padded W1 cols / b1), so the full-width
    # sum equals the sum over the real H for the mean; the centered variance masks the
    # padded lanes explicitly (two-pass LN: no E[h^2]-mu^2 cancellation).
    valid = lax.broadcasted_iota(jnp.int32, (1, Hp), 1) < hidden_dim
    inv_h = 1.0 / hidden_dim
    mu = jnp.sum(h, axis=-1, keepdims=True) * inv_h
    d = jnp.where(valid, h - mu, 0.0)
    var = jnp.sum(d * d, axis=-1, keepdims=True) * inv_h
    h = d * (g_ref[...] * lax.rsqrt(var + LN_EPS)) + be_ref[...]
    h = jnp.maximum(h, 0.0)
    # TODO(synk): training-mode dropout not implemented (inference path only).

    # ---- classifier layer 2: logits (module returns logits when labels is None) ----
    y = jnp.dot(h.astype(w2_ref.dtype), w2_ref[...],
                preferred_element_type=f32) + b2_ref[...]
    o_ref[...] = y.astype(o_ref.dtype)


def temporal_classification_head(x, params, mask=None, *, block_rows=512,
                                 mxu_dtype=jnp.bfloat16):
    """x: [B, S, H] float32.  params: dict of kernel-layout (in, out) weights.
    Returns logits [B, num_classes] float32 (matches module forward with labels=None)."""
    B, S, H = x.shape
    O = params["W2"].shape[1]
    f32 = jnp.float32

    Hp = _round_up(H, 128)       # lane-dense hidden / MXU K dim
    Op = _round_up(O, 128)       # lane-dense logits -> unmasked vst
    Sp = _round_up(S, 8)         # sublane-aligned seq (keeps in-kernel reshapes tile-aligned)

    # ---- batch-tile sizing: VMEM-aware, MXU-aligned, >=2 tiles for v7x megacore ----
    # Conservative per-row VMEM: f32 x block double-buffered (8) + bf16 MXU copy (2)
    # + f32 tanh activations (4) + two f32 broadcast products (8)  [bytes per (s, h) elem].
    per_row = Sp * Hp * 22
    budget = 20 << 20            # per-tile budget with headroom in v7x's 32 MiB scoped VMEM
    rows_cap = max(8, (budget // max(per_row, 1)) // 8 * 8)
    TB = min(_round_up(B, 8), _round_up(block_rows, 8), rows_cap)
    if TB >= 256:
        TB = TB // 256 * 256     # keep the 256-row MXU (v6e/v7x) fed
    elif TB >= 128:
        TB = TB // 128 * 128     # v5e MXU alignment
    # TODO(synk): if S*Hp is so large that rows_cap forces TB < 128, chunk the seq axis
    #             (extra accumulating grid dim) instead of shrinking TB further.
    Bp = _round_up(B, TB)
    if Bp // TB == 1 and TB >= 16:
        # v7x has 2 TensorCores: make sure the "parallel" batch axis has >= 2 tiles.
        TB = max(8, _round_up(TB // 2, 8))
        Bp = _round_up(B, TB)
    grid = (Bp // TB,)

    def pad2(a, r, c, dtype=f32):
        return jnp.pad(a, ((0, r - a.shape[0]), (0, c - a.shape[1]))).astype(dtype)

    # x stays f32 and batch-major: zero-pad only (no cast, no transpose in the wrapper).
    xk = jnp.pad(x.astype(f32), ((0, Bp - B), (0, Sp - S), (0, Hp - H)))

    if mask is None:
        mask = jnp.ones((B, S), f32)
    # Padded batch rows / padded seq positions are fully masked -> ~0 attention weight.
    mk = jnp.pad(mask.astype(f32), ((0, Bp - B), (0, Sp - S)))[:, :, None]   # (Bp, Sp, 1)

    wa1 = pad2(params["Wa1"], Hp, Hp, mxu_dtype)     # attention Linear(H, H)
    ba1 = pad2(params["ba1"], 1, Hp)
    wa2 = pad2(params["wa2"], 1, Hp)                 # attention Linear(H, 1, no bias) as a row
    w1 = pad2(params["W1"], Hp, Hp, mxu_dtype)
    b1 = pad2(params["b1"], 1, Hp)
    gamma = pad2(params["gamma"], 1, Hp)             # zero-padded: kills padded LN columns
    beta = pad2(params["beta"], 1, Hp)
    w2 = pad2(params["W2"], Hp, Op, mxu_dtype)
    b2 = pad2(params["b2"], 1, Op)

    def wspec(r, c):
        # Constant index map: weight block fetched once, stays resident across batch tiles.
        # TODO(synk): single-buffer these (pipeline_mode=pl.Buffered(1)) to reclaim VMEM on
        #             v7x once buffer_count=1 support is confirmed for this JAX version.
        return pl.BlockSpec((r, c), lambda i: (0, 0))

    bytes_of = lambda a: int(a.size) * a.dtype.itemsize
    cost = pl.CostEstimate(
        flops=2 * Bp * Sp * Hp * Hp            # attention scorer matmul
              + 4 * Bp * Sp * Hp               # wa2 dot + pooling
              + 2 * Bp * Hp * Hp + 2 * Bp * Hp * Op,   # classifier
        transcendentals=Bp * Sp * Hp + Bp * Sp,         # tanh + exp
        bytes_accessed=sum(bytes_of(a) for a in
                           (xk, mk, wa1, ba1, wa2, w1, b1, gamma, beta, w2, b2))
                       + Bp * Op * 4,
    )

    kernel = functools.partial(
        _head_kernel, hidden_dim=H,
        bf16_eltwise=(jnp.dtype(mxu_dtype) == jnp.dtype(jnp.bfloat16)))

    out = pl.pallas_call(
        kernel,
        out_shape=jax.ShapeDtypeStruct((Bp, Op), f32),
        grid=grid,
        in_specs=[
            pl.BlockSpec((TB, Sp, Hp), lambda i: (i, 0, 0)),   # x (batch-major f32)
            pl.BlockSpec((TB, Sp, 1), lambda i: (i, 0, 0)),    # mask
            wspec(Hp, Hp),   # Wa1
            wspec(1, Hp),    # ba1
            wspec(1, Hp),    # wa2
            wspec(Hp, Hp),   # W1
            wspec(1, Hp),    # b1
            wspec(1, Hp),    # gamma
            wspec(1, Hp),    # beta
            wspec(Hp, Op),   # W2
            wspec(1, Op),    # b2
        ],
        out_specs=pl.BlockSpec((TB, Op), lambda i: (i, 0)),
        compiler_params=pltpu.CompilerParams(
            dimension_semantics=("parallel",),       # shard batch tiles over v7x's 2 TCs
            vmem_limit_bytes=48 * 1024 * 1024,       # > v5e 16MiB / v6e 32MiB defaults, < v7x 64MiB
        ),
        cost_estimate=cost,
    )(xk, mk, wa1, ba1, wa2, w1, b1, gamma, beta, w2, b2)

    return out[:B, :O]


def init_params(key, hidden_dim, num_classes):
    """Xavier-uniform Linear weights (zero biases), LN weight=1/bias=0 — matches
    _init_parameters().  Weights stored in kernel layout (in, out)."""
    ka1, ka2, k1, k2 = jax.random.split(key, 4)

    def xavier(k, fan_in, fan_out):
        bound = math.sqrt(6.0 / (fan_in + fan_out))
        return jax.random.uniform(k, (fan_in, fan_out), jnp.float32, -bound, bound)

    return {
        "Wa1": xavier(ka1, hidden_dim, hidden_dim),      # attention Linear(H, H)
        "ba1": jnp.zeros((1, hidden_dim), jnp.float32),
        "wa2": xavier(ka2, hidden_dim, 1).T,             # attention Linear(H, 1, bias=False)
        "W1": xavier(k1, hidden_dim, hidden_dim),        # classifier layer 1
        "b1": jnp.zeros((1, hidden_dim), jnp.float32),
        "gamma": jnp.ones((1, hidden_dim), jnp.float32), # LayerNorm weight
        "beta": jnp.zeros((1, hidden_dim), jnp.float32), # LayerNorm bias
        "W2": xavier(k2, hidden_dim, num_classes),       # classifier layer 2
        "b2": jnp.zeros((1, num_classes), jnp.float32),
    }


def reference(x, p, mask=None):
    """Pure-JAX f32 reference of TemporalClassificationHead.forward (labels=None, eval)."""
    t = jnp.tanh(x @ p["Wa1"] + p["ba1"])                # [B, S, H]
    s = jnp.einsum("bsh,h->bs", t, p["wa2"][0])          # [B, S]
    if mask is not None:
        s = s * mask + (1.0 - mask) * (-1e9)
    w = jax.nn.softmax(s, axis=1)[..., None]             # [B, S, 1]
    pooled = (x * w).sum(axis=1)                         # [B, H]
    h = pooled @ p["W1"] + p["b1"]
    mu = h.mean(-1, keepdims=True)
    var = ((h - mu) ** 2).mean(-1, keepdims=True)
    h = (h - mu) / jnp.sqrt(var + LN_EPS) * p["gamma"] + p["beta"]
    h = jnp.maximum(h, 0.0)
    return h @ p["W2"] + p["b2"]


if __name__ == "__main__":
    key = jax.random.PRNGKey(0)
    kx, kp = jax.random.split(key)

    batch, seq, hidden_dim, num_classes = 2, 8, 32, 8
    x = jax.random.normal(kx, (batch, seq, hidden_dim), jnp.float32)
    params = init_params(kp, hidden_dim, num_classes)

    # Deterministic mask: row 0 has 5 valid timesteps, row 1 all 8.
    lengths = jnp.array([5, 8], jnp.int32)
    mask = (jnp.arange(seq)[None, :] < lengths[:, None]).astype(jnp.float32)

    # --- f32 MXU operands: tight numerical checks (masked and unmasked) ---
    ref = reference(x, params)
    out_f32 = temporal_classification_head(x, params, mxu_dtype=jnp.float32)
    jax.block_until_ready(out_f32)
    assert out_f32.shape == (batch, num_classes)
    assert jnp.allclose(out_f32, ref, atol=1e-4, rtol=1e-4), "f32 mismatch vs reference"

    ref_m = reference(x, params, mask)
    out_f32_m = temporal_classification_head(x, params, mask, mxu_dtype=jnp.float32)
    jax.block_until_ready(out_f32_m)
    assert jnp.allclose(out_f32_m, ref_m, atol=1e-4, rtol=1e-4), "masked f32 mismatch"

    # --- bf16 MXU operands (performance path): looser tolerance vs the f32 reference ---
    out_bf16 = temporal_classification_head(x, params, mxu_dtype=jnp.bfloat16)
    jax.block_until_ready(out_bf16)
    assert out_bf16.shape == (batch, num_classes)
    assert jnp.allclose(out_bf16, ref, atol=5e-2, rtol=5e-2), "bf16 mismatch vs reference"

    print("KERNEL_OK")
</pallas_src>

<mosaic_0001>
module attributes {stable_mosaic.version = 11 : i64} {
  func.func @_head_kernel(%arg0: i32, %arg1: memref<8x8x128xf32, #tpu.memory_space<vmem>>, %arg2: memref<8x8x1xf32, #tpu.memory_space<vmem>>, %arg3: memref<128x128xf32, #tpu.memory_space<vmem>>, %arg4: memref<1x128xf32, #tpu.memory_space<vmem>>, %arg5: memref<1x128xf32, #tpu.memory_space<vmem>>, %arg6: memref<128x128xf32, #tpu.memory_space<vmem>>, %arg7: memref<1x128xf32, #tpu.memory_space<vmem>>, %arg8: memref<1x128xf32, #tpu.memory_space<vmem>>, %arg9: memref<1x128xf32, #tpu.memory_space<vmem>>, %arg10: memref<128x128xf32, #tpu.memory_space<vmem>>, %arg11: memref<1x128xf32, #tpu.memory_space<vmem>>, %arg12: memref<8x128xf32, #tpu.memory_space<vmem>>) attributes {dimension_semantics = [#tpu.dimension_semantics<parallel>], iteration_bounds = array<i64: 1>, scalar_prefetch = 0 : i64, scratch_operands = 0 : i64, tpu.core_type = #tpu.core_type<tc>, window_params = [{transform_indices = @transform_0, window_bounds = array<i64: 8, 8, 128>}, {transform_indices = @transform_1, window_bounds = array<i64: 8, 8, 1>}, {pipeline_mode = #tpu.pipeline_mode<synchronous>, transform_indices = @transform_2, window_bounds = array<i64: 128, 128>}, {pipeline_mode = #tpu.pipeline_mode<synchronous>, transform_indices = @transform_3, window_bounds = array<i64: 1, 128>}, {pipeline_mode = #tpu.pipeline_mode<synchronous>, transform_indices = @transform_4, window_bounds = array<i64: 1, 128>}, {pipeline_mode = #tpu.pipeline_mode<synchronous>, transform_indices = @transform_5, window_bounds = array<i64: 128, 128>}, {pipeline_mode = #tpu.pipeline_mode<synchronous>, transform_indices = @transform_6, window_bounds = array<i64: 1, 128>}, {pipeline_mode = #tpu.pipeline_mode<synchronous>, transform_indices = @transform_7, window_bounds = array<i64: 1, 128>}, {pipeline_mode = #tpu.pipeline_mode<synchronous>, transform_indices = @transform_8, window_bounds = array<i64: 1, 128>}, {pipeline_mode = #tpu.pipeline_mode<synchronous>, transform_indices = @transform_9, window_bounds = array<i64: 128, 128>}, {pipeline_mode = #tpu.pipeline_mode<synchronous>, transform_indices = @transform_10, window_bounds = array<i64: 1, 128>}, {transform_indices = @transform_11, window_bounds = array<i64: 8, 128>}]} {
    %c0 = arith.constant 0 : index
    %c0_0 = arith.constant 0 : index
    %c0_1 = arith.constant 0 : index
    %0 = vector.load %arg1[%c0, %c0_0, %c0_1] : memref<8x8x128xf32, #tpu.memory_space<vmem>>, vector<8x8x128xf32>
    %1 = vector.shape_cast %0 : vector<8x8x128xf32> to vector<64x128xf32>
    %c0_2 = arith.constant 0 : index
    %c0_3 = arith.constant 0 : index
    %2 = vector.load %arg3[%c0_2, %c0_3] : memref<128x128xf32, #tpu.memory_space<vmem>>, vector<128x128xf32>
    %cst = arith.constant dense<0.000000e+00> : vector<64x128xf32>
    %3 = tpu.matmul %1, %2, %cst {dimension_numbers = #tpu.dot_dimension_numbers<[1], [0], [0], [1], [0, 0, 1, 1], [], []>} : vector<64x128xf32>, vector<128x128xf32>, vector<64x128xf32> -> vector<64x128xf32>
    %c0_4 = arith.constant 0 : index
    %c0_5 = arith.constant 0 : index
    %4 = vector.load %arg4[%c0_4, %c0_5] : memref<1x128xf32, #tpu.memory_space<vmem>>, vector<1x128xf32>
    %5 = vector.broadcast %4 : vector<1x128xf32> to vector<64x128xf32>
    %6 = arith.addf %3, %5 : vector<64x128xf32>
    %7 = math.tanh %6 : vector<64x128xf32>
    %8 = vector.shape_cast %7 : vector<64x128xf32> to vector<8x8x128xf32>
    %c0_6 = arith.constant 0 : index
    %c0_7 = arith.constant 0 : index
    %9 = vector.load %arg5[%c0_6, %c0_7] : memref<1x128xf32, #tpu.memory_space<vmem>>, vector<1x128xf32>
    %10 = vector.shape_cast %9 : vector<1x128xf32> to vector<1x1x128xf32>
    %11 = vector.broadcast %10 : vector<1x1x128xf32> to vector<8x8x128xf32>
    %12 = arith.mulf %8, %11 : vector<8x8x128xf32>
    %cst_8 = arith.constant dense<0.000000e+00> : vector<8x8xf32>
    %13 = vector.multi_reduction <add>, %12, %cst_8 [2] : vector<8x8x128xf32> to vector<8x8xf32>
    %14 = vector.shape_cast %13 : vector<8x8xf32> to vector<8x8x1xf32>
    %c0_9 = arith.constant 0 : index
    %c0_10 = arith.constant 0 : index
    %c0_11 = arith.constant 0 : index
    %15 = vector.load %arg2[%c0_9, %c0_10, %c0_11] : memref<8x8x1xf32, #tpu.memory_space<vmem>>, vector<8x8x1xf32>
    %16 = arith.mulf %14, %15 : vector<8x8x1xf32>
    %cst_12 = arith.constant 1.000000e+00 : f32
    %17 = vector.broadcast %cst_12 : f32 to vector<8x8x1xf32>
    %18 = arith.subf %17, %15 : vector<8x8x1xf32>
    %cst_13 = arith.constant -1.000000e+09 : f32
    %19 = vector.broadcast %cst_13 : f32 to vector<8x8x1xf32>
    %20 = arith.mulf %18, %19 : vector<8x8x1xf32>
    %21 = arith.addf %16, %20 : vector<8x8x1xf32>
    %cst_14 = arith.constant dense<0xFF800000> : vector<8x1xf32>
    %22 = vector.multi_reduction <maximumf>, %21, %cst_14 [1] : vector<8x8x1xf32> to vector<8x1xf32>
    %23 = vector.shape_cast %22 : vector<8x1xf32> to vector<8x1x1xf32>
    %24 = vector.broadcast %23 : vector<8x1x1xf32> to vector<8x8x1xf32>
    %25 = arith.subf %21, %24 : vector<8x8x1xf32>
    %26 = math.exp %25 : vector<8x8x1xf32>
    %cst_15 = arith.constant dense<0.000000e+00> : vector<8x1xf32>
    %27 = vector.multi_reduction <add>, %26, %cst_15 [1] : vector<8x8x1xf32> to vector<8x1xf32>
    %28 = vector.shape_cast %27 : vector<8x1xf32> to vector<8x1x1xf32>
    %29 = vector.broadcast %28 : vector<8x1x1xf32> to vector<8x8x1xf32>
    %30 = arith.divf %26, %29 : vector<8x8x1xf32>
    %31 = vector.broadcast %30 : vector<8x8x1xf32> to vector<8x8x128xf32>
    %32 = arith.mulf %0, %31 : vector<8x8x128xf32>
    %cst_16 = arith.constant dense<0.000000e+00> : vector<8x128xf32>
    %33 = vector.multi_reduction <add>, %32, %cst_16 [1] : vector<8x8x128xf32> to vector<8x128xf32>
    %c0_17 = arith.constant 0 : index
    %c0_18 = arith.constant 0 : index
    %34 = vector.load %arg6[%c0_17, %c0_18] : memref<128x128xf32, #tpu.memory_space<vmem>>, vector<128x128xf32>
    %cst_19 = arith.constant dense<0.000000e+00> : vector<8x128xf32>
    %35 = tpu.matmul %33, %34, %cst_19 {dimension_numbers = #tpu.dot_dimension_numbers<[1], [0], [0], [1], [0, 0, 1, 1], [], []>} : vector<8x128xf32>, vector<128x128xf32>, vector<8x128xf32> -> vector<8x128xf32>
    %c0_20 = arith.constant 0 : index
    %c0_21 = arith.constant 0 : index
    %36 = vector.load %arg7[%c0_20, %c0_21] : memref<1x128xf32, #tpu.memory_space<vmem>>, vector<1x128xf32>
    %37 = vector.broadcast %36 : vector<1x128xf32> to vector<8x128xf32>
    %38 = arith.addf %35, %37 : vector<8x128xf32>
    %39 = tpu.iota {dimensions = array<i32: 1>} : vector<1x128xi32>
    %c32_i32 = arith.constant 32 : i32
    %40 = vector.broadcast %c32_i32 : i32 to vector<1x128xi32>
    %41 = arith.cmpi slt, %39, %40 : vector<1x128xi32>
    %cst_22 = arith.constant dense<0.000000e+00> : vector<8xf32>
    %42 = vector.multi_reduction <add>, %38, %cst_22 [1] : vector<8x128xf32> to vector<8xf32>
    %43 = vector.shape_cast %42 : vector<8xf32> to vector<8x1xf32>
    %cst_23 = arith.constant 3.125000e-02 : f32
    %44 = vector.broadcast %cst_23 : f32 to vector<8x1xf32>
    %45 = arith.mulf %43, %44 : vector<8x1xf32>
    %46 = vector.broadcast %45 : vector<8x1xf32> to vector<8x128xf32>
    %47 = arith.subf %38, %46 : vector<8x128xf32>
    %cst_24 = arith.constant 0.000000e+00 : f32
    %48 = vector.shape_cast %41 : vector<1x128xi1> to vector<1x128xi1>
    %49 = vector.broadcast %48 : vector<1x128xi1> to vector<8x128xi1>
    %50 = vector.broadcast %cst_24 : f32 to vector<8x128xf32>
    %51 = arith.select %49, %47, %50 : vector<8x128xi1>, vector<8x128xf32>
    %52 = arith.mulf %51, %51 : vector<8x128xf32>
    %cst_25 = arith.constant dense<0.000000e+00> : vector<8xf32>
    %53 = vector.multi_reduction <add>, %52, %cst_25 [1] : vector<8x128xf32> to vector<8xf32>
    %54 = vector.shape_cast %53 : vector<8xf32> to vector<8x1xf32>
    %cst_26 = arith.constant 3.125000e-02 : f32
    %55 = vector.broadcast %cst_26 : f32 to vector<8x1xf32>
    %56 = arith.mulf %54, %55 : vector<8x1xf32>
    %c0_27 = arith.constant 0 : index
    %c0_28 = arith.constant 0 : index
    %57 = vector.load %arg8[%c0_27, %c0_28] : memref<1x128xf32, #tpu.memory_space<vmem>>, vector<1x128xf32>
    %cst_29 = arith.constant 9.99999974E-6 : f32
    %58 = vector.broadcast %cst_29 : f32 to vector<8x1xf32>
    %59 = arith.addf %56, %58 : vector<8x1xf32>
    %60 = math.rsqrt %59 : vector<8x1xf32>
    %61 = vector.broadcast %57 : vector<1x128xf32> to vector<8x128xf32>
    %62 = vector.broadcast %60 : vector<8x1xf32> to vector<8x128xf32>
    %63 = arith.mulf %61, %62 : vector<8x128xf32>
    %64 = arith.mulf %51, %63 : vector<8x128xf32>
    %c0_30 = arith.constant 0 : index
    %c0_31 = arith.constant 0 : index
    %65 = vector.load %arg9[%c0_30, %c0_31] : memref<1x128xf32, #tpu.memory_space<vmem>>, vector<1x128xf32>
    %66 = vector.broadcast %65 : vector<1x128xf32> to vector<8x128xf32>
    %67 = arith.addf %64, %66 : vector<8x128xf32>
    %cst_32 = arith.constant 0.000000e+00 : f32
    %68 = vector.broadcast %cst_32 : f32 to vector<8x128xf32>
    %69 = arith.maximumf %67, %68 : vector<8x128xf32>
    %c0_33 = arith.constant 0 : index
    %c0_34 = arith.constant 0 : index
    %70 = vector.load %arg10[%c0_33, %c0_34] : memref<128x128xf32, #tpu.memory_space<vmem>>, vector<128x128xf32>
    %cst_35 = arith.constant dense<0.000000e+00> : vector<8x128xf32>
    %71 = tpu.matmul %69, %70, %cst_35 {dimension_numbers = #tpu.dot_dimension_numbers<[1], [0], [0], [1], [0, 0, 1, 1], [], []>} : vector<8x128xf32>, vector<128x128xf32>, vector<8x128xf32> -> vector<8x128xf32>
    %c0_36 = arith.constant 0 : index
    %c0_37 = arith.constant 0 : index
    %72 = vector.load %arg11[%c0_36, %c0_37] : memref<1x128xf32, #tpu.memory_space<vmem>>, vector<1x128xf32>
    %73 = vector.broadcast %72 : vector<1x128xf32> to vector<8x128xf32>
    %74 = arith.addf %71, %73 : vector<8x128xf32>
    %c0_38 = arith.constant 0 : index
    %c0_39 = arith.constant 0 : index
    %75 = vector.load %arg12[%c0_38, %c0_39] : memref<8x128xf32, #tpu.memory_space<vmem>>, vector<8x128xf32>
    tpu.vector_store %arg12[%c0_38, %c0_39], %74 {strides = array<i32>} : memref<8x128xf32, #tpu.memory_space<vmem>>, vector<8x128xf32>,
    return
  }
  func.func @transform_0(%arg0: i32) -> (i32, i32, i32) {
    %c0_i32 = arith.constant 0 : i32
    %c0_i32_0 = arith.constant 0 : i32
    %c0_i32_1 = arith.constant 0 : i32
    return %arg0, %c0_i32, %c0_i32_0 : i32, i32, i32
  }
  func.func @transform_1(%arg0: i32) -> (i32, i32, i32) {
    %c0_i32 = arith.constant 0 : i32
    %c0_i32_0 = arith.constant 0 : i32
    %c0_i32_1 = arith.constant 0 : i32
    return %arg0, %c0_i32, %c0_i32_0 : i32, i32, i32
  }
  func.func @transform_2(%arg0: i32) -> (i32, i32) {
    %c0_i32 = arith.constant 0 : i32
    %c0_i32_0 = arith.constant 0 : i32
    %c0_i32_1 = arith.constant 0 : i32
    return %c0_i32, %c0_i32_0 : i32, i32
  }
  func.func @transform_3(%arg0: i32) -> (i32, i32) {
    %c0_i32 = arith.constant 0 : i32
    %c0_i32_0 = arith.constant 0 : i32
    %c0_i32_1 = arith.constant 0 : i32
    return %c0_i32, %c0_i32_0 : i32, i32
  }
  func.func @transform_4(%arg0: i32) -> (i32, i32) {
    %c0_i32 = arith.constant 0 : i32
    %c0_i32_0 = arith.constant 0 : i32
    %c0_i32_1 = arith.constant 0 : i32
    return %c0_i32, %c0_i32_0 : i32, i32
  }
  func.func @transform_5(%arg0: i32) -> (i32, i32) {
    %c0_i32 = arith.constant 0 : i32
    %c0_i32_0 = arith.constant 0 : i32
    %c0_i32_1 = arith.constant 0 : i32
    return %c0_i32, %c0_i32_0 : i32, i32
  }
  func.func @transform_6(%arg0: i32) -> (i32, i32) {
    %c0_i32 = arith.constant 0 : i32
    %c0_i32_0 = arith.constant 0 : i32
    %c0_i32_1 = arith.constant 0 : i32
    return %c0_i32, %c0_i32_0 : i32, i32
  }
  func.func @transform_7(%arg0: i32) -> (i32, i32) {
    %c0_i32 = arith.constant 0 : i32
    %c0_i32_0 = arith.constant 0 : i32
    %c0_i32_1 = arith.constant 0 : i32
    return %c0_i32, %c0_i32_0 : i32, i32
  }
  func.func @transform_8(%arg0: i32) -> (i32, i32) {
    %c0_i32 = arith.constant 0 : i32
    %c0_i32_0 = arith.constant 0 : i32
    %c0_i32_1 = arith.constant 0 : i32
    return %c0_i32, %c0_i32_0 : i32, i32
  }
  func.func @transform_9(%arg0: i32) -> (i32, i32) {
    %c0_i32 = arith.constant 0 : i32
    %c0_i32_0 = arith.constant 0 : i32
    %c0_i32_1 = arith.constant 0 : i32
    return %c0_i32, %c0_i32_0 : i32, i32
  }
  func.func @transform_10(%arg0: i32) -> (i32, i32) {
    %c0_i32 = arith.constant 0 : i32
    %c0_i32_0 = arith.constant 0 : i32
    %c0_i32_1 = arith.constant 0 : i32
    return %c0_i32, %c0_i32_0 : i32, i32
  }
  func.func @transform_11(%arg0: i32) -> (i32, i32) {
    %c0_i32 = arith.constant 0 : i32
    %c0_i32_0 = arith.constant 0 : i32
    return %arg0, %c0_i32 : i32, i32
  }
}

</mosaic_0001>

<llo_original>
// kernel: tpu_custom_call.1
$region0: #{tpu_custom_call.1}
  #allocation0 [shape = 'u32[]', space=smem, size = 0x4, offset = 0x4, fixed_abs, tag = 'smem constant byte address 0x4 - core index']
  #allocation1 [shape = 'u32[144,128]{1,0:T(1,128)}', space=vmem, size = 0x12000, scoped, tag = 'internal scratch']
  %s0 = inlined_call_operand.vmem [shape: f32[8,8,128], index: 0, kind: input, shape index: {}]
  %s1 = inlined_call_operand.vmem [shape: f32[8,8,1], index: 1, kind: input, shape index: {}]
  %s2 = inlined_call_operand.hbm [shape: f32[128,128], index: 2, kind: input, shape index: {}]
  %s3 = inlined_call_operand.vmem [shape: f32[1,128], index: 3, kind: input, shape index: {}]
  %s4 = inlined_call_operand.vmem [shape: f32[1,128], index: 4, kind: input, shape index: {}]
  %s5 = inlined_call_operand.hbm [shape: f32[128,128], index: 5, kind: input, shape index: {}]
  %s6 = inlined_call_operand.vmem [shape: f32[1,128], index: 6, kind: input, shape index: {}]
  %s7 = inlined_call_operand.vmem [shape: f32[1,128], index: 7, kind: input, shape index: {}]
  %s8 = inlined_call_operand.vmem [shape: f32[1,128], index: 8, kind: input, shape index: {}]
  %s9 = inlined_call_operand.hbm [shape: f32[128,128], index: 9, kind: input, shape index: {}]
  %s10 = inlined_call_operand.vmem [shape: f32[1,128], index: 10, kind: input, shape index: {}]
  %s11 = inlined_call_operand.hbm [shape: f32[8,128], index: 11, kind: output, shape index: {}]
  %s12 = sld [smem:[#allocation0]]
  $region66: #{tpu_custom_call.1} parent=0
    _
  %s14 = ssub.s32 1, %s12
  %s15 = scalar_select 0, %s14, %s12
  $region1: #{tpu_custom_call.1} parent=0
    #allocation2 [shape = 'u8[65536]{0}', space=vmem, size = 0x10000, scoped, tag = 'input window, operand 2, single buffered']
    #allocation3 [shape = 's32[1]{0}', space=sflag, size = 0x4, scoped, tag = 'scoped memory for tpu_custom_call.1']
    #allocation4 [shape = 's32[1]{0}', space=sflag, size = 0x4, scoped, tag = 'scoped memory for tpu_custom_call.1']
    #allocation5 [shape = 'u8[65536]{0}', space=vmem, size = 0x10000, scoped, tag = 'input window, operand 5, single buffered']
    #allocation6 [shape = 's32[1]{0}', space=sflag, size = 0x4, scoped, tag = 'scoped memory for tpu_custom_call.1']
    #allocation7 [shape = 'u8[65536]{0}', space=vmem, size = 0x10000, scoped, tag = 'input window, operand 9, single buffered']
    #allocation8 [shape = 'u8[4096]{0}', space=vmem, size = 0x1000, scoped, tag = 'output window, operand 0, single buffered']
    %16 = vsyncpa [#allocation3], 0
    %17 = vsyncpa [#allocation6], 0
    %18 = vsyncpa [#allocation4], 0
    // Predicated region
    $region2: #{tpu_custom_call.1} parent=1 // pred_check
      _
    $region3: #{tpu_custom_call.1} parent=1 // pred_check_branch
      %20 = sbr.rel (0) target = $region5
    $region4: #{tpu_custom_call.1} parent=1 // pred_region
      _
    $region5: #{tpu_custom_call.1} parent=1 // pred_fallthru
      _
    // Predicated region
    $region6: #{tpu_custom_call.1} parent=1 // pred_check
      _
    $region7: #{tpu_custom_call.1} parent=1 // pred_check_branch
      %22 = sbr.rel (0) target = $region9
    $region8: #{tpu_custom_call.1} parent=1 // pred_region
      _
    $region9: #{tpu_custom_call.1} parent=1 // pred_fallthru
      _
    // Predicated region
    $region10: #{tpu_custom_call.1} parent=1 // pred_check
      _
    $region11: #{tpu_custom_call.1} parent=1 // pred_check_branch
      %24 = sbr.rel (0) target = $region13
    $region12: #{tpu_custom_call.1} parent=1 // pred_region
      %s26 = ssub.s32 2048, 2048
      %27 = vsyncadd [#allocation3], %s26
      %s28 = sshll.u32 [#allocation2], 4
      %s29 = int_to_ptr.vmem [resolvable:$true] %s28
      %34 = dma.hbm_to_vmem [thread:$0]  %s2, 2048, %s29, [#allocation3], 128, 128, 8
    $region13: #{tpu_custom_call.1} parent=1 // pred_fallthru
      _
    // Predicated region
    $region14: #{tpu_custom_call.1} parent=1 // pred_check
      _
    $region15: #{tpu_custom_call.1} parent=1 // pred_check_branch
      %36 = sbr.rel (0) target = $region17
    $region16: #{tpu_custom_call.1} parent=1 // pred_region
      _
    $region17: #{tpu_custom_call.1} parent=1 // pred_fallthru
      _
    // Predicated region
    $region18: #{tpu_custom_call.1} parent=1 // pred_check
      _
    $region19: #{tpu_custom_call.1} parent=1 // pred_check_branch
      %38 = sbr.rel (0) target = $region21
    $region20: #{tpu_custom_call.1} parent=1 // pred_region
      _
    $region21: #{tpu_custom_call.1} parent=1 // pred_fallthru
      _
    // Predicated region
    $region22: #{tpu_custom_call.1} parent=1 // pred_check
      _
    $region23: #{tpu_custom_call.1} parent=1 // pred_check_branch
      %40 = sbr.rel (0) target = $region25
    $region24: #{tpu_custom_call.1} parent=1 // pred_region
      %s42 = ssub.s32 2048, 2048
      %43 = vsyncadd [#allocation6], %s42
      %s44 = sshll.u32 [#allocation5], 4
      %s45 = int_to_ptr.vmem [resolvable:$true] %s44
      %50 = dma.hbm_to_vmem [thread:$0]  %s5, 2048, %s45, [#allocation6], 128, 128, 8
    $region25: #{tpu_custom_call.1} parent=1 // pred_fallthru
      _
    // Predicated region
    $region26: #{tpu_custom_call.1} parent=1 // pred_check
      _
    $region27: #{tpu_custom_call.1} parent=1 // pred_check_branch
      %52 = sbr.rel (0) target = $region29
    $region28: #{tpu_custom_call.1} parent=1 // pred_region
      _
    $region29: #{tpu_custom_call.1} parent=1 // pred_fallthru
      _
    // Predicated region
    $region30: #{tpu_custom_call.1} parent=1 // pred_check
      _
    $region31: #{tpu_custom_call.1} parent=1 // pred_check_branch
      %54 = sbr.rel (0) target = $region33
    $region32: #{tpu_custom_call.1} parent=1 // pred_region
      _
    $region33: #{tpu_custom_call.1} parent=1 // pred_fallthru
      _
    // Predicated region
    $region34: #{tpu_custom_call.1} parent=1 // pred_check
      _
    $region35: #{tpu_custom_call.1} parent=1 // pred_check_branch
      %56 = sbr.rel (0) target = $region37
    $region36: #{tpu_custom_call.1} parent=1 // pred_region
      _
    $region37: #{tpu_custom_call.1} parent=1 // pred_fallthru
      _
    // Predicated region
    $region38: #{tpu_custom_call.1} parent=1 // pred_check
      _
    $region39: #{tpu_custom_call.1} parent=1 // pred_check_branch
      %58 = sbr.rel (0) target = $region41
    $region40: #{tpu_custom_call.1} parent=1 // pred_region
      %s60 = ssub.s32 2048, 2048
      %61 = vsyncadd [#allocation6], %s60
      %s62 = sshll.u32 [#allocation7], 4
      %s63 = int_to_ptr.vmem [resolvable:$true] %s62
      %68 = dma.hbm_to_vmem [thread:$0]  %s9, 2048, %s63, [#allocation6], 128, 128, 8
    $region41: #{tpu_custom_call.1} parent=1 // pred_fallthru
      _
    // Predicated region
    $region42: #{tpu_custom_call.1} parent=1 // pred_check
      _
    $region43: #{tpu_custom_call.1} parent=1 // pred_check_branch
      %70 = sbr.rel (0) target = $region45
    $region44: #{tpu_custom_call.1} parent=1 // pred_region
      _
    $region45: #{tpu_custom_call.1} parent=1 // pred_fallthru
      _
    // Predicated region
    $region46: #{tpu_custom_call.1} parent=1 // pred_check
      _
    $region47: #{tpu_custom_call.1} parent=1 // pred_check_branch
      %72 = sbr.rel (0) target = $region49
    $region48: #{tpu_custom_call.1} parent=1 // pred_region
      %73 = dma.done [#allocation3], 2048
    $region49: #{tpu_custom_call.1} parent=1 // pred_fallthru
      _
    // Predicated region
    $region50: #{tpu_custom_call.1} parent=1 // pred_check
      _
    $region51: #{tpu_custom_call.1} parent=1 // pred_check_branch
      %75 = sbr.rel (0) target = $region53
    $region52: #{tpu_custom_call.1} parent=1 // pred_region
      %76 = dma.done [#allocation6], 2048
    $region53: #{tpu_custom_call.1} parent=1 // pred_fallthru
      _
    // Predicated region
    $region54: #{tpu_custom_call.1} parent=1 // pred_check
      _
    $region55: #{tpu_custom_call.1} parent=1 // pred_check_branch
      %78 = sbr.rel (0) target = $region57
    $region56: #{tpu_custom_call.1} parent=1 // pred_region
      %79 = dma.done [#allocation6], 2048
    $region57: #{tpu_custom_call.1} parent=1 // pred_fallthru
      _
    %v80 = vld [vmem:[%s0] sm:$0xff]
    %v81 = vld [vmem:[%s0 + $0x8] sm:$0xff]
    %v82 = vld [vmem:[%s0 + $0x10] sm:$0xff]
    %v83 = vld [vmem:[%s0 + $0x18] sm:$0xff]
    %v84 = vld [vmem:[%s0 + $0x20] sm:$0xff]
    %v85 = vld [vmem:[%s0 + $0x28] sm:$0xff]
    %v86 = vld [vmem:[%s0 + $0x30] sm:$0xff]
    %v87 = vld [vmem:[%s0 + $0x38] sm:$0xff]
    %v88 = vld [vmem:[#allocation2] sm:$0xff]
    %v89 = vld [vmem:[#allocation2 + $0x8] sm:$0xff]
    %v90 = vld [vmem:[#allocation2 + $0x10] sm:$0xff]
    %v91 = vld [vmem:[#allocation2 + $0x18] sm:$0xff]
    %v92 = vld [vmem:[#allocation2 + $0x20] sm:$0xff]
    %v93 = vld [vmem:[#allocation2 + $0x28] sm:$0xff]
    %v94 = vld [vmem:[#allocation2 + $0x30] sm:$0xff]
    %v95 = vld [vmem:[#allocation2 + $0x38] sm:$0xff]
    %v96 = vld [vmem:[#allocation2 + $0x40] sm:$0xff]
    %v97 = vld [vmem:[#allocation2 + $0x48] sm:$0xff]
    %v98 = vld [vmem:[#allocation2 + $0x50] sm:$0xff]
    %v99 = vld [vmem:[#allocation2 + $0x58] sm:$0xff]
    %v100 = vld [vmem:[#allocation2 + $0x60] sm:$0xff]
    %v101 = vld [vmem:[#allocation2 + $0x68] sm:$0xff]
    %v102 = vld [vmem:[#allocation2 + $0x70] sm:$0xff]
    %v103 = vld [vmem:[#allocation2 + $0x78] sm:$0xff]
    %v104 = vld [vmem:[%s3] sm:$0x1]
    %v106 = vlaneseq
    %v107 = vshrl.u32 %v106, 7
    %v108 = vsub.s32 0, %v107
    %v109 = vrot.slane %v104, %v108
    %111 = vmatprep.subr.mxu0 0.0
    %112 = vmatpush1.msra.mxu0 %v103
    %113 = vmatprep.subr.mxu0 0.0
    %114 = vmatpush1.msra.mxu0 %v102
    %115 = vmatprep.subr.mxu0 0.0
    %116 = vmatpush1.msra.mxu0 %v101
    %117 = vmatprep.subr.mxu0 0.0
    %118 = vmatpush1.msra.mxu0 %v100
    %119 = vmatprep.subr.mxu0 0.0
    %120 = vmatpush1.msra.mxu0 %v99
    %121 = vmatprep.subr.mxu0 0.0
    %122 = vmatpush1.msra.mxu0 %v98
    %123 = vmatprep.subr.mxu0 0.0
    %124 = vmatpush1.msra.mxu0 %v97
    %125 = vmatprep.subr.mxu0 0.0
    %126 = vmatpush1.msra.mxu0 %v96
    %127 = vmatprep.subr.mxu0 0.0
    %128 = vmatpush1.msra.mxu0 %v95
    %129 = vmatprep.subr.mxu0 0.0
    %130 = vmatpush1.msra.mxu0 %v94
    %131 = vmatprep.subr.mxu0 0.0
    %132 = vmatpush1.msra.mxu0 %v93
    %133 = vmatprep.subr.mxu0 0.0
    %134 = vmatpush1.msra.mxu0 %v92
    %135 = vmatprep.subr.mxu0 0.0
    %136 = vmatpush1.msra.mxu0 %v91
    %137 = vmatprep.subr.mxu0 0.0
    %138 = vmatpush1.msra.mxu0 %v90
    %139 = vmatprep.subr.mxu0 0.0
    %140 = vmatpush1.msra.mxu0 %v89
    %141 = vmatprep.subr.mxu0 0.0
    %142 = vmatpush1.msra.mxu0 %v88
    %143 = vmatprep.subr.mxu0 0.0
    %144 = vmatpush2.msra.mxu0 0.0
    %145 = vmatprep.subr.mxu0 0.0
    %146 = vmatpush2.msra.mxu0 0.0
    %147 = vmatprep.subr.mxu0 0.0
    %148 = vmatpush2.msra.mxu0 0.0
    %149 = vmatprep.subr.mxu0 0.0
    %150 = vmatpush2.msra.mxu0 0.0
    %151 = vmatprep.subr.mxu0 0.0
    %152 = vmatpush2.msra.mxu0 0.0
    %153 = vmatprep.subr.mxu0 0.0
    %154 = vmatpush2.msra.mxu0 0.0
    %155 = vmatprep.subr.mxu0 0.0
    %156 = vmatpush2.msra.mxu0 0.0
    %157 = vmatprep.subr.mxu0 0.0
    %158 = vmatpush2.msra.mxu0 0.0
    %159 = vmatprep.subr.mxu0 0.0
    %160 = vmatpush2.msra.mxu0 0.0
    %161 = vmatprep.subr.mxu0 0.0
    %162 = vmatpush2.msra.mxu0 0.0
    %163 = vmatprep.subr.mxu0 0.0
    %164 = vmatpush2.msra.mxu0 0.0
    %165 = vmatprep.subr.mxu0 0.0
    %166 = vmatpush2.msra.mxu0 0.0
    %167 = vmatprep.subr.mxu0 0.0
    %168 = vmatpush2.msra.mxu0 0.0
    %169 = vmatprep.subr.mxu0 0.0
    %170 = vmatpush2.msra.mxu0 0.0
    %171 = vmatprep.subr.mxu0 0.0
    %172 = vmatpush2.msra.mxu0 0.0
    %173 = vmatprep.subr.mxu0 0.0
    %174 = vmatpush2.msra.mxu0 0.0
    %175 = vmatprep.mubr.f32.mxu0 0.0
    %176 = vmatmul.mubr.f32.gmra.mxu0 %v80
    %v177 = vpop.f32.mrf.mxu0
    %v178 = vadd.f32 %v109, %v177
    %v179 = vpop.f32.mrf.mxu0
    %180 = vmatprep.mubr.f32.mxu0 0.0
    %181 = vmatmul.mubr.f32.gmra.mxu0 %v81
    %v182 = vpop.f32.mrf.mxu0
    %v183 = vadd.f32 %v109, %v182
    %v184 = vpop.f32.mrf.mxu0
    %185 = vmatprep.mubr.f32.mxu0 0.0
    %186 = vmatmul.mubr.f32.gmra.mxu0 %v82
    %v187 = vpop.f32.mrf.mxu0
    %v188 = vadd.f32 %v109, %v187
    %v189 = vpop.f32.mrf.mxu0
    %190 = vmatprep.mubr.f32.mxu0 0.0
    %191 = vmatmul.mubr.f32.gmra.mxu0 %v83
    %v192 = vpop.f32.mrf.mxu0
    %v193 = vadd.f32 %v109, %v192
    %v194 = vpop.f32.mrf.mxu0
    %195 = vmatprep.mubr.f32.mxu0 0.0
    %196 = vmatmul.mubr.f32.gmra.mxu0 %v84
    %v197 = vpop.f32.mrf.mxu0
    %v198 = vadd.f32 %v109, %v197
    %v199 = vpop.f32.mrf.mxu0
    %200 = vmatprep.mubr.f32.mxu0 0.0
    %201 = vmatmul.mubr.f32.gmra.mxu0 %v85
    %v202 = vpop.f32.mrf.mxu0
    %v203 = vadd.f32 %v109, %v202
    %v204 = vpop.f32.mrf.mxu0
    %205 = vmatprep.mubr.f32.mxu0 0.0
    %206 = vmatmul.mubr.f32.gmra.mxu0 %v86
    %v207 = vpop.f32.mrf.mxu0
    %v208 = vadd.f32 %v109, %v207
    %v209 = vpop.f32.mrf.mxu0
    %210 = vmatprep.mubr.f32.mxu0 0.0
    %211 = vmatmul.mubr.f32.gmra.mxu0 %v87
    %v212 = vpop.f32.mrf.mxu0
    %v213 = vadd.f32 %v109, %v212
    %v214 = vpop.f32.mrf.mxu0
    %215 = vdwg.mxu0
    %v216 = vtanh.pop %v178
    %v217 = vtanh.pop %v183
    %v218 = vtanh.pop %v188
    %v219 = vtanh.pop %v193
    %v220 = vtanh.pop %v198
    %v221 = vtanh.pop %v203
    %v222 = vtanh.pop %v208
    %v223 = vtanh.pop %v213
    %v224 = vld [vmem:[%s4] sm:$0x1]
    %v226 = vlaneseq
    %v227 = vshrl.u32 %v226, 7
    %v228 = vsub.s32 0, %v227
    %v229 = vrot.slane %v224, %v228
    %v231 = vmul.f32 %v216, %v229
    %v232 = vmul.f32 %v217, %v229
    %v233 = vmul.f32 %v218, %v229
    %v234 = vmul.f32 %v219, %v229
    %v235 = vmul.f32 %v220, %v229
    %v236 = vmul.f32 %v221, %v229
    %v237 = vmul.f32 %v222, %v229
    %v238 = vmul.f32 %v223, %v229
    %239 = vadd.xlane.f32.xlu0 %v231
    %v240 = vpop.xlane.xlu0 %239
    %241 = vadd.xlane.f32.xlu0 %v232
    %v242 = vpop.xlane.xlu0 %241
    %243 = vadd.xlane.f32.xlu0 %v233
    %v244 = vpop.xlane.xlu0 %243
    %245 = vadd.xlane.f32.xlu0 %v234
    %v246 = vpop.xlane.xlu0 %245
    %247 = vadd.xlane.f32.xlu0 %v235
    %v248 = vpop.xlane.xlu0 %247
    %249 = vadd.xlane.f32.xlu0 %v236
    %v250 = vpop.xlane.xlu0 %249
    %251 = vadd.xlane.f32.xlu0 %v237
    %v252 = vpop.xlane.xlu0 %251
    %253 = vadd.xlane.f32.xlu0 %v238
    %v254 = vpop.xlane.xlu0 %253
    %v255 = vld [vmem:[%s1] sm:$0xff]
    %v256 = vld [vmem:[%s1 + $0x8] sm:$0xff]
    %v257 = vld [vmem:[%s1 + $0x10] sm:$0xff]
    %v258 = vld [vmem:[%s1 + $0x18] sm:$0xff]
    %v259 = vld [vmem:[%s1 + $0x20] sm:$0xff]
    %v260 = vld [vmem:[%s1 + $0x28] sm:$0xff]
    %v261 = vld [vmem:[%s1 + $0x30] sm:$0xff]
    %v262 = vld [vmem:[%s1 + $0x38] sm:$0xff]
    %v263 = vmul.f32 %v240, %v255
    %v264 = vmul.f32 %v242, %v256
    %v265 = vmul.f32 %v244, %v257
    %v266 = vmul.f32 %v246, %v258
    %v267 = vmul.f32 %v248, %v259
    %v268 = vmul.f32 %v250, %v260
    %v269 = vmul.f32 %v252, %v261
    %v270 = vmul.f32 %v254, %v262
    %v271 = vsub.f32 1.0, %v255
    %v272 = vsub.f32 1.0, %v256
    %v273 = vsub.f32 1.0, %v257
    %v274 = vsub.f32 1.0, %v258
    %v275 = vsub.f32 1.0, %v259
    %v276 = vsub.f32 1.0, %v260
    %v277 = vsub.f32 1.0, %v261
    %v278 = vsub.f32 1.0, %v262
    %v279 = vmul.f32 %v271, -1e+09
    %v280 = vmul.f32 %v272, -1e+09
    %v281 = vmul.f32 %v273, -1e+09
    %v282 = vmul.f32 %v274, -1e+09
    %v283 = vmul.f32 %v275, -1e+09
    %v284 = vmul.f32 %v276, -1e+09
    %v285 = vmul.f32 %v277, -1e+09
    %v286 = vmul.f32 %v278, -1e+09
    %v287 = vadd.f32 %v263, %v279
    %v288 = vadd.f32 %v264, %v280
    %v289 = vadd.f32 %v265, %v281
    %v290 = vadd.f32 %v266, %v282
    %v291 = vadd.f32 %v267, %v283
    %v292 = vadd.f32 %v268, %v284
    %v293 = vadd.f32 %v269, %v285
    %v294 = vadd.f32 %v270, %v286
    %vm295 = vcmask 7168
    %v296 = vsel %vm295, %v287, -inf
    %v297 = vrot.slane %v296, 4
    %v298 = vmax.f32 %v296, %v297
    %v299 = vrot.slane %v298, 2
    %v300 = vmax.f32 %v298, %v299
    %v301 = vrot.slane %v300, 1
    %v302 = vmax.f32 %v300, %v301
    %v303 = vsel %vm295, %v288, -inf
    %v304 = vrot.slane %v303, 4
    %v305 = vmax.f32 %v303, %v304
    %v306 = vrot.slane %v305, 2
    %v307 = vmax.f32 %v305, %v306
    %v308 = vrot.slane %v307, 1
    %v309 = vmax.f32 %v307, %v308
    %v310 = vsel %vm295, %v289, -inf
    %v311 = vrot.slane %v310, 4
    %v312 = vmax.f32 %v310, %v311
    %v313 = vrot.slane %v312, 2
    %v314 = vmax.f32 %v312, %v313
    %v315 = vrot.slane %v314, 1
    %v316 = vmax.f32 %v314, %v315
    %v317 = vsel %vm295, %v290, -inf
    %v318 = vrot.slane %v317, 4
    %v319 = vmax.f32 %v317, %v318
    %v320 = vrot.slane %v319, 2
    %v321 = vmax.f32 %v319, %v320
    %v322 = vrot.slane %v321, 1
    %v323 = vmax.f32 %v321, %v322
    %v324 = vsel %vm295, %v291, -inf
    %v325 = vrot.slane %v324, 4
    %v326 = vmax.f32 %v324, %v325
    %v327 = vrot.slane %v326, 2
    %v328 = vmax.f32 %v326, %v327
    %v329 = vrot.slane %v328, 1
    %v330 = vmax.f32 %v328, %v329
    %v331 = vsel %vm295, %v292, -inf
    %v332 = vrot.slane %v331, 4
    %v333 = vmax.f32 %v331, %v332
    %v334 = vrot.slane %v333, 2
    %v335 = vmax.f32 %v333, %v334
    %v336 = vrot.slane %v335, 1
    %v337 = vmax.f32 %v335, %v336
    %v338 = vsel %vm295, %v293, -inf
    %v339 = vrot.slane %v338, 4
    %v340 = vmax.f32 %v338, %v339
    %v341 = vrot.slane %v340, 2
    %v342 = vmax.f32 %v340, %v341
    %v343 = vrot.slane %v342, 1
    %v344 = vmax.f32 %v342, %v343
    %v345 = vsel %vm295, %v294, -inf
    %v346 = vrot.slane %v345, 4
    %v347 = vmax.f32 %v345, %v346
    %v348 = vrot.slane %v347, 2
    %v349 = vmax.f32 %v347, %v348
    %v350 = vrot.slane %v349, 1
    %v351 = vmax.f32 %v349, %v350
    %v352 = vsub.f32 %v287, %v302
    %v353 = vsub.f32 %v288, %v309
    %v354 = vsub.f32 %v289, %v316
    %v355 = vsub.f32 %v290, %v323
    %v356 = vsub.f32 %v291, %v330
    %v357 = vsub.f32 %v292, %v337
    %v358 = vsub.f32 %v293, %v344
    %v359 = vsub.f32 %v294, %v351
    %v360 = vmul.f32 %v352, 1.442695
    %v361 = vpow.pop %v360
    %v362 = vmul.f32 %v353, 1.442695
    %v363 = vpow.pop %v362
    %v364 = vmul.f32 %v354, 1.442695
    %v365 = vpow.pop %v364
    %v366 = vmul.f32 %v355, 1.442695
    %v367 = vpow.pop %v366
    %v368 = vmul.f32 %v356, 1.442695
    %v369 = vpow.pop %v368
    %v370 = vmul.f32 %v357, 1.442695
    %v371 = vpow.pop %v370
    %v372 = vmul.f32 %v358, 1.442695
    %v373 = vpow.pop %v372
    %v374 = vmul.f32 %v359, 1.442695
    %v375 = vpow.pop %v374
    %v376 = vsel %vm295, %v361, 0.0
    %v377 = vrot.slane %v376, 4
    %v378 = vadd.f32 %v376, %v377
    %v379 = vrot.slane %v378, 2
    %v380 = vadd.f32 %v378, %v379
    %v381 = vrot.slane %v380, 1
    %v382 = vadd.f32 %v380, %v381
    %v383 = vsel %vm295, %v363, 0.0
    %v384 = vrot.slane %v383, 4
    %v385 = vadd.f32 %v383, %v384
    %v386 = vrot.slane %v385, 2
    %v387 = vadd.f32 %v385, %v386
    %v388 = vrot.slane %v387, 1
    %v389 = vadd.f32 %v387, %v388
    %v390 = vsel %vm295, %v365, 0.0
    %v391 = vrot.slane %v390, 4
    %v392 = vadd.f32 %v390, %v391
    %v393 = vrot.slane %v392, 2
    %v394 = vadd.f32 %v392, %v393
    %v395 = vrot.slane %v394, 1
    %v396 = vadd.f32 %v394, %v395
    %v397 = vsel %vm295, %v367, 0.0
    %v398 = vrot.slane %v397, 4
    %v399 = vadd.f32 %v397, %v398
    %v400 = vrot.slane %v399, 2
    %v401 = vadd.f32 %v399, %v400
    %v402 = vrot.slane %v401, 1
    %v403 = vadd.f32 %v401, %v402
    %v404 = vsel %vm295, %v369, 0.0
    %v405 = vrot.slane %v404, 4
    %v406 = vadd.f32 %v404, %v405
    %v407 = vrot.slane %v406, 2
    %v408 = vadd.f32 %v406, %v407
    %v409 = vrot.slane %v408, 1
    %v410 = vadd.f32 %v408, %v409
    %v411 = vsel %vm295, %v371, 0.0
    %v412 = vrot.slane %v411, 4
    %v413 = vadd.f32 %v411, %v412
    %v414 = vrot.slane %v413, 2
    %v415 = vadd.f32 %v413, %v414
    %v416 = vrot.slane %v415, 1
    %v417 = vadd.f32 %v415, %v416
    %v418 = vsel %vm295, %v373, 0.0
    %v419 = vrot.slane %v418, 4
    %v420 = vadd.f32 %v418, %v419
    %v421 = vrot.slane %v420, 2
    %v422 = vadd.f32 %v420, %v421
    %v423 = vrot.slane %v422, 1
    %v424 = vadd.f32 %v422, %v423
    %v425 = vsel %vm295, %v375, 0.0
    %v426 = vrot.slane %v425, 4
    %v427 = vadd.f32 %v425, %v426
    %v428 = vrot.slane %v427, 2
    %v429 = vadd.f32 %v427, %v428
    %v430 = vrot.slane %v429, 1
    %v431 = vadd.f32 %v429, %v430
    %v432 = vrcp.pop %v382
    %v433 = vmul.f32 %v361, %v432
    %v434 = vrcp.pop %v389
    %v435 = vmul.f32 %v363, %v434
    %v436 = vrcp.pop %v396
    %v437 = vmul.f32 %v365, %v436
    %v438 = vrcp.pop %v403
    %v439 = vmul.f32 %v367, %v438
    %v440 = vrcp.pop %v410
    %v441 = vmul.f32 %v369, %v440
    %v442 = vrcp.pop %v417
    %v443 = vmul.f32 %v371, %v442
    %v444 = vrcp.pop %v424
    %v445 = vmul.f32 %v373, %v444
    %v446 = vrcp.pop %v431
    %v447 = vmul.f32 %v375, %v446
    %449 = vset.pattern.permute.xlu0 0
    %450 = vperm.xlu0 %449, %v433
    %v451 = vpop.permute.xlu0 %450
    %454 = vset.pattern.permute.xlu0 0
    %455 = vperm.xlu0 %454, %v435
    %v456 = vpop.permute.xlu0 %455
    %459 = vset.pattern.permute.xlu0 0
    %460 = vperm.xlu0 %459, %v437
    %v461 = vpop.permute.xlu0 %460
    %464 = vset.pattern.permute.xlu0 0
    %465 = vperm.xlu0 %464, %v439
    %v466 = vpop.permute.xlu0 %465
    %469 = vset.pattern.permute.xlu0 0
    %470 = vperm.xlu0 %469, %v441
    %v471 = vpop.permute.xlu0 %470
    %474 = vset.pattern.permute.xlu0 0
    %475 = vperm.xlu0 %474, %v443
    %v476 = vpop.permute.xlu0 %475
    %479 = vset.pattern.permute.xlu0 0
    %480 = vperm.xlu0 %479, %v445
    %v481 = vpop.permute.xlu0 %480
    %484 = vset.pattern.permute.xlu0 0
    %485 = vperm.xlu0 %484, %v447
    %v486 = vpop.permute.xlu0 %485
    %v488 = vmul.f32 %v80, %v451
    %v489 = vmul.f32 %v81, %v456
    %v490 = vmul.f32 %v82, %v461
    %v491 = vmul.f32 %v83, %v466
    %v492 = vmul.f32 %v84, %v471
    %v493 = vmul.f32 %v85, %v476
    %v494 = vmul.f32 %v86, %v481
    %v495 = vmul.f32 %v87, %v486
    %v496 = vrot.slane %v488, 4
    %v497 = vadd.f32 %v488, %v496
    %v498 = vrot.slane %v497, 2
    %v499 = vadd.f32 %v497, %v498
    %v500 = vrot.slane %v499, 1
    %v501 = vadd.f32 %v499, %v500
    %v502 = vrot.slane %v489, 4
    %v503 = vadd.f32 %v489, %v502
    %v504 = vrot.slane %v503, 2
    %v505 = vadd.f32 %v503, %v504
    %v506 = vrot.slane %v505, 1
    %v507 = vadd.f32 %v505, %v506
    %v508 = vrot.slane %v490, 4
    %v509 = vadd.f32 %v490, %v508
    %v510 = vrot.slane %v509, 2
    %v511 = vadd.f32 %v509, %v510
    %v512 = vrot.slane %v511, 1
    %v513 = vadd.f32 %v511, %v512
    %v514 = vrot.slane %v491, 4
    %v515 = vadd.f32 %v491, %v514
    %v516 = vrot.slane %v515, 2
    %v517 = vadd.f32 %v515, %v516
    %v518 = vrot.slane %v517, 1
    %v519 = vadd.f32 %v517, %v518
    %v520 = vrot.slane %v492, 4
    %v521 = vadd.f32 %v492, %v520
    %v522 = vrot.slane %v521, 2
    %v523 = vadd.f32 %v521, %v522
    %v524 = vrot.slane %v523, 1
    %v525 = vadd.f32 %v523, %v524
    %v526 = vrot.slane %v493, 4
    %v527 = vadd.f32 %v493, %v526
    %v528 = vrot.slane %v527, 2
    %v529 = vadd.f32 %v527, %v528
    %v530 = vrot.slane %v529, 1
    %v531 = vadd.f32 %v529, %v530
    %v532 = vrot.slane %v494, 4
    %v533 = vadd.f32 %v494, %v532
    %v534 = vrot.slane %v533, 2
    %v535 = vadd.f32 %v533, %v534
    %v536 = vrot.slane %v535, 1
    %v537 = vadd.f32 %v535, %v536
    %v538 = vrot.slane %v495, 4
    %v539 = vadd.f32 %v495, %v538
    %v540 = vrot.slane %v539, 2
    %v541 = vadd.f32 %v539, %v540
    %v542 = vrot.slane %v541, 1
    %v543 = vadd.f32 %v541, %v542
    %v544 = vld [vmem:[#allocation5] sm:$0xff]
    %v545 = vld [vmem:[#allocation5 + $0x8] sm:$0xff]
    %v546 = vld [vmem:[#allocation5 + $0x10] sm:$0xff]
    %v547 = vld [vmem:[#allocation5 + $0x18] sm:$0xff]
    %v548 = vld [vmem:[#allocation5 + $0x20] sm:$0xff]
    %v549 = vld [vmem:[#allocation5 + $0x28] sm:$0xff]
    %v550 = vld [vmem:[#allocation5 + $0x30] sm:$0xff]
    %v551 = vld [vmem:[#allocation5 + $0x38] sm:$0xff]
    %v552 = vld [vmem:[#allocation5 + $0x40] sm:$0xff]
    %v553 = vld [vmem:[#allocation5 + $0x48] sm:$0xff]
    %v554 = vld [vmem:[#allocation5 + $0x50] sm:$0xff]
    %v555 = vld [vmem:[#allocation5 + $0x58] sm:$0xff]
    %v556 = vld [vmem:[#allocation5 + $0x60] sm:$0xff]
    %v557 = vld [vmem:[#allocation5 + $0x68] sm:$0xff]
    %v558 = vld [vmem:[#allocation5 + $0x70] sm:$0xff]
    %v559 = vld [vmem:[#allocation5 + $0x78] sm:$0xff]
    %v560 = vld [vmem:[%s6] sm:$0x1]
    %v562 = vlaneseq
    %v563 = vshrl.u32 %v562, 7
    %v564 = vsub.s32 0, %v563
    %v565 = vrot.slane %v560, %v564
    %vm575 = vcmask 1041409
    %v576 = vsel %vm575, %v507, %v501
    %vm577 = vcmask 1042434
    %v578 = vsel %vm577, %v513, %v576
    %vm579 = vcmask 1043459
    %v580 = vsel %vm579, %v519, %v578
    %vm581 = vcmask 1044484
    %v582 = vsel %vm581, %v525, %v580
    %vm583 = vcmask 1045509
    %v584 = vsel %vm583, %v531, %v582
    %vm585 = vcmask 1046534
    %v586 = vsel %vm585, %v537, %v584
    %vm587 = vcmask 1047559
    %v588 = vsel %vm587, %v543, %v586
    %590 = vmatprep.subr.mxu0 0.0
    %591 = vmatpush1.msra.mxu0 %v559
    %592 = vmatprep.subr.mxu0 0.0
    %593 = vmatpush1.msra.mxu0 %v558
    %594 = vmatprep.subr.mxu0 0.0
    %595 = vmatpush1.msra.mxu0 %v557
    %596 = vmatprep.subr.mxu0 0.0
    %597 = vmatpush1.msra.mxu0 %v556
    %598 = vmatprep.subr.mxu0 0.0
    %599 = vmatpush1.msra.mxu0 %v555
    %600 = vmatprep.subr.mxu0 0.0
    %601 = vmatpush1.msra.mxu0 %v554
    %602 = vmatprep.subr.mxu0 0.0
    %603 = vmatpush1.msra.mxu0 %v553
    %604 = vmatprep.subr.mxu0 0.0
    %605 = vmatpush1.msra.mxu0 %v552
    %606 = vmatprep.subr.mxu0 0.0
    %607 = vmatpush1.msra.mxu0 %v551
    %608 = vmatprep.subr.mxu0 0.0
    %609 = vmatpush1.msra.mxu0 %v550
    %610 = vmatprep.subr.mxu0 0.0
    %611 = vmatpush1.msra.mxu0 %v549
    %612 = vmatprep.subr.mxu0 0.0
    %613 = vmatpush1.msra.mxu0 %v548
    %614 = vmatprep.subr.mxu0 0.0
    %615 = vmatpush1.msra.mxu0 %v547
    %616 = vmatprep.subr.mxu0 0.0
    %617 = vmatpush1.msra.mxu0 %v546
    %618 = vmatprep.subr.mxu0 0.0
    %619 = vmatpush1.msra.mxu0 %v545
    %620 = vmatprep.subr.mxu0 0.0
    %621 = vmatpush1.msra.mxu0 %v544
    %622 = vmatprep.subr.mxu0 0.0
    %623 = vmatpush2.msra.mxu0 0.0
    %624 = vmatprep.subr.mxu0 0.0
    %625 = vmatpush2.msra.mxu0 0.0
    %626 = vmatprep.subr.mxu0 0.0
    %627 = vmatpush2.msra.mxu0 0.0
    %628 = vmatprep.subr.mxu0 0.0
    %629 = vmatpush2.msra.mxu0 0.0
    %630 = vmatprep.subr.mxu0 0.0
    %631 = vmatpush2.msra.mxu0 0.0
    %632 = vmatprep.subr.mxu0 0.0
    %633 = vmatpush2.msra.mxu0 0.0
    %634 = vmatprep.subr.mxu0 0.0
    %635 = vmatpush2.msra.mxu0 0.0
    %636 = vmatprep.subr.mxu0 0.0
    %637 = vmatpush2.msra.mxu0 0.0
    %638 = vmatprep.subr.mxu0 0.0
    %639 = vmatpush2.msra.mxu0 0.0
    %640 = vmatprep.subr.mxu0 0.0
    %641 = vmatpush2.msra.mxu0 0.0
    %642 = vmatprep.subr.mxu0 0.0
    %643 = vmatpush2.msra.mxu0 0.0
    %644 = vmatprep.subr.mxu0 0.0
    %645 = vmatpush2.msra.mxu0 0.0
    %646 = vmatprep.subr.mxu0 0.0
    %647 = vmatpush2.msra.mxu0 0.0
    %648 = vmatprep.subr.mxu0 0.0
    %649 = vmatpush2.msra.mxu0 0.0
    %650 = vmatprep.subr.mxu0 0.0
    %651 = vmatpush2.msra.mxu0 0.0
    %652 = vmatprep.subr.mxu0 0.0
    %653 = vmatpush2.msra.mxu0 0.0
    %654 = vmatprep.mubr.f32.mxu0 0.0
    %655 = vmatmul.mubr.f32.gmra.mxu0 %v588
    %v656 = vpop.f32.mrf.mxu0
    %v657 = vadd.f32 %v565, %v656
    %v658 = vpop.f32.mrf.mxu0
    %659 = vdwg.mxu0
    %v660 = vlaneseq
    %v661 = vand.u32 %v660, 127
    %vm662 = vcmp.lt.s32.totalorder %v661, 32
    %663 = vadd.xlane.f32.xlu0 %v657
    %v664 = vpop.xlane.xlu0 %663
    %v665 = vmul.f32 %v664, 0.03125
    %v666 = vsub.f32 %v657, %v665
    %v667 = vsel %vm662, 1, 0
    %vm668 = vcmp.eq.s32.totalorder %v667, 1
    %v669 = vsel %vm668, %v666, 0.0
    %v670 = vmul.f32 %v669, %v669
    %671 = vadd.xlane.f32.xlu0 %v670
    %v672 = vpop.xlane.xlu0 %671
    %v673 = vmul.f32 %v672, 0.03125
    %v674 = vld [vmem:[%s7] sm:$0x1]
    %v675 = vadd.f32 %v673, 1e-05
    %v676 = vrsqrt.pop %v675
    %v678 = vlaneseq
    %v679 = vshrl.u32 %v678, 7
    %v680 = vsub.s32 0, %v679
    %v681 = vrot.slane %v674, %v680
    %v683 = vmul.f32 %v681, %v676
    %v684 = vmul.f32 %v669, %v683
    %v685 = vld [vmem:[%s8] sm:$0x1]
    %v687 = vlaneseq
    %v688 = vshrl.u32 %v687, 7
    %v689 = vsub.s32 0, %v688
    %v690 = vrot.slane %v685, %v689
    %v692 = vadd.f32 %v684, %v690
    %v693 = vmax.f32 %v692, 0.0
    %v694 = vld [vmem:[#allocation7] sm:$0xff]
    %v695 = vld [vmem:[#allocation7 + $0x8] sm:$0xff]
    %v696 = vld [vmem:[#allocation7 + $0x10] sm:$0xff]
    %v697 = vld [vmem:[#allocation7 + $0x18] sm:$0xff]
    %v698 = vld [vmem:[#allocation7 + $0x20] sm:$0xff]
    %v699 = vld [vmem:[#allocation7 + $0x28] sm:$0xff]
    %v700 = vld [vmem:[#allocation7 + $0x30] sm:$0xff]
    %v701 = vld [vmem:[#allocation7 + $0x38] sm:$0xff]
    %v702 = vld [vmem:[#allocation7 + $0x40] sm:$0xff]
    %v703 = vld [vmem:[#allocation7 + $0x48] sm:$0xff]
    %v704 = vld [vmem:[#allocation7 + $0x50] sm:$0xff]
    %v705 = vld [vmem:[#allocation7 + $0x58] sm:$0xff]
    %v706 = vld [vmem:[#allocation7 + $0x60] sm:$0xff]
    %v707 = vld [vmem:[#allocation7 + $0x68] sm:$0xff]
    %v708 = vld [vmem:[#allocation7 + $0x70] sm:$0xff]
    %v709 = vld [vmem:[#allocation7 + $0x78] sm:$0xff]
    %v710 = vld [vmem:[%s10] sm:$0x1]
    %v712 = vlaneseq
    %v713 = vshrl.u32 %v712, 7
    %v714 = vsub.s32 0, %v713
    %v715 = vrot.slane %v710, %v714
    %717 = vmatprep.subr.mxu0 0.0
    %718 = vmatpush1.msra.mxu0 %v709
    %719 = vmatprep.subr.mxu0 0.0
    %720 = vmatpush1.msra.mxu0 %v708
    %721 = vmatprep.subr.mxu0 0.0
    %722 = vmatpush1.msra.mxu0 %v707
    %723 = vmatprep.subr.mxu0 0.0
    %724 = vmatpush1.msra.mxu0 %v706
    %725 = vmatprep.subr.mxu0 0.0
    %726 = vmatpush1.msra.mxu0 %v705
    %727 = vmatprep.subr.mxu0 0.0
    %728 = vmatpush1.msra.mxu0 %v704
    %729 = vmatprep.subr.mxu0 0.0
    %730 = vmatpush1.msra.mxu0 %v703
    %731 = vmatprep.subr.mxu0 0.0
    %732 = vmatpush1.msra.mxu0 %v702
    %733 = vmatprep.subr.mxu0 0.0
    %734 = vmatpush1.msra.mxu0 %v701
    %735 = vmatprep.subr.mxu0 0.0
    %736 = vmatpush1.msra.mxu0 %v700
    %737 = vmatprep.subr.mxu0 0.0
    %738 = vmatpush1.msra.mxu0 %v699
    %739 = vmatprep.subr.mxu0 0.0
    %740 = vmatpush1.msra.mxu0 %v698
    %741 = vmatprep.subr.mxu0 0.0
    %742 = vmatpush1.msra.mxu0 %v697
    %743 = vmatprep.subr.mxu0 0.0
    %744 = vmatpush1.msra.mxu0 %v696
    %745 = vmatprep.subr.mxu0 0.0
    %746 = vmatpush1.msra.mxu0 %v695
    %747 = vmatprep.subr.mxu0 0.0
    %748 = vmatpush1.msra.mxu0 %v694
    %749 = vmatprep.subr.mxu0 0.0
    %750 = vmatpush2.msra.mxu0 0.0
    %751 = vmatprep.subr.mxu0 0.0
    %752 = vmatpush2.msra.mxu0 0.0
    %753 = vmatprep.subr.mxu0 0.0
    %754 = vmatpush2.msra.mxu0 0.0
    %755 = vmatprep.subr.mxu0 0.0
    %756 = vmatpush2.msra.mxu0 0.0
    %757 = vmatprep.subr.mxu0 0.0
    %758 = vmatpush2.msra.mxu0 0.0
    %759 = vmatprep.subr.mxu0 0.0
    %760 = vmatpush2.msra.mxu0 0.0
    %761 = vmatprep.subr.mxu0 0.0
    %762 = vmatpush2.msra.mxu0 0.0
    %763 = vmatprep.subr.mxu0 0.0
    %764 = vmatpush2.msra.mxu0 0.0
    %765 = vmatprep.subr.mxu0 0.0
    %766 = vmatpush2.msra.mxu0 0.0
    %767 = vmatprep.subr.mxu0 0.0
    %768 = vmatpush2.msra.mxu0 0.0
    %769 = vmatprep.subr.mxu0 0.0
    %770 = vmatpush2.msra.mxu0 0.0
    %771 = vmatprep.subr.mxu0 0.0
    %772 = vmatpush2.msra.mxu0 0.0
    %773 = vmatprep.subr.mxu0 0.0
    %774 = vmatpush2.msra.mxu0 0.0
    %775 = vmatprep.subr.mxu0 0.0
    %776 = vmatpush2.msra.mxu0 0.0
    %777 = vmatprep.subr.mxu0 0.0
    %778 = vmatpush2.msra.mxu0 0.0
    %779 = vmatprep.subr.mxu0 0.0
    %780 = vmatpush2.msra.mxu0 0.0
    %781 = vmatprep.mubr.f32.mxu0 0.0
    %782 = vmatmul.mubr.f32.gmra.mxu0 %v693
    %v783 = vpop.f32.mrf.mxu0
    %v784 = vadd.f32 %v715, %v783
    %v785 = vpop.f32.mrf.mxu0
    %786 = vdwg.mxu0
    %787 = vst [vmem:[#allocation8] sm:$0xff] %v784
    // Predicated region
    $region58: #{tpu_custom_call.1} parent=1 // pred_check
      _
    $region59: #{tpu_custom_call.1} parent=1 // pred_check_branch
      %789 = sbr.rel (0) target = $region61
    $region60: #{tpu_custom_call.1} parent=1 // pred_region
      %s791 = ssub.s32 128, 128
      %792 = vsyncadd [#allocation4], %s791
      %s794 = sshll.u32 [#allocation8], 4
      %s795 = int_to_ptr.vmem [resolvable:$true] %s794
      %797 = dma.vmem_to_hbm [thread:$0]  %s795, 128, %s11, [#allocation4]
    $region61: #{tpu_custom_call.1} parent=1 // pred_fallthru
      _
    // Predicated region
    $region62: #{tpu_custom_call.1} parent=1 // pred_check
      _
    $region63: #{tpu_custom_call.1} parent=1 // pred_check_branch
      %799 = sbr.rel (0) target = $region65
    $region64: #{tpu_custom_call.1} parent=1 // pred_region
      %800 = dma.done [#allocation4], 128
    $region65: #{tpu_custom_call.1} parent=1 // pred_fallthru
      _
    %801 = vsyncpa [#allocation3], 1
    %802 = vsyncpa [#allocation6], 1
    %803 = vsyncpa [#allocation4], 1

</llo_original>
